<compile_context>
chip_gen: v7x
topology: tpu7x:2x2x1
jax: 0.10.0
libtpu: 0.0.40
codegen_flags: <defaults>
</compile_context>

<pallas_src>
import jax
import jax.numpy as jnp
from jax.experimental import pallas as pl
from jax.experimental.pallas import tpu as pltpu

LAYER_SIZES = [784, 100, 50, 32, 16, 10]
NUM_CLASSES = LAYER_SIZES[-1]
PAD = 128  # lane width: every hidden/output feature dim is padded to this


def _round_up(x, m):
    return (x + m - 1) // m * m


def mlp_kernel(x_ref, w1_ref, wp_ref, bp_ref, o_ref):
    """Fused 5-layer MLP + masked softmax over one (TB, 784) batch tile.

    x_ref : (TB, 784)        activations (f32 or bf16)
    w1_ref: (784, 128)       layer-1 weight, output cols >=100 are zero
    wp_ref: (4, 128, 128)    layers 2..5 weights, zero-padded
    bp_ref: (5, 128)         all biases, zero-padded
    o_ref : (TB, 128)        softmax probs; lanes >=10 are zero
    """
    f32 = jnp.float32
    cdtype = w1_ref.dtype  # MXU operand dtype (f32 or bf16)

    # Layer 1: (TB,784) @ (784,128) -> f32 accumulate, then bias + ReLU in f32.
    h = jnp.dot(x_ref[...], w1_ref[...], preferred_element_type=f32)
    h = jnp.maximum(h + bp_ref[0:1, :].astype(f32), 0.0)

    # Layers 2..5: all (128,128), single MXU pass each.
    n_rest = wp_ref.shape[0]
    for l in range(n_rest):
        h = jnp.dot(h.astype(cdtype), wp_ref[l], preferred_element_type=f32)
        h = h + bp_ref[l + 1:l + 2, :].astype(f32)
        if l < n_rest - 1:
            h = jnp.maximum(h, 0.0)

    # Softmax over the real 10 classes only: mask padded lanes to -inf so
    # exp(pad) == 0 and the denominator is exact.
    lane = jax.lax.broadcasted_iota(jnp.int32, h.shape, 1)
    logits = jnp.where(lane < NUM_CLASSES, h, -jnp.inf)
    m = jnp.max(logits, axis=-1, keepdims=True)
    e = jnp.exp(logits - m)
    s = jnp.sum(e, axis=-1, keepdims=True)
    if cdtype == jnp.bfloat16:
        inv = pl.reciprocal(s, approx=True)   # EUP slot is otherwise idle
    else:
        inv = 1.0 / s                         # keep f32 path bit-tight
    o_ref[...] = (e * inv).astype(o_ref.dtype)


def init_params(key):
    """Deterministic PyTorch-like init: U(-1/sqrt(fan_in), 1/sqrt(fan_in)).

    Weights stored (in, out) so the kernel does x @ W; biases as (1, out)."""
    params = []
    for fan_in, fan_out in zip(LAYER_SIZES[:-1], LAYER_SIZES[1:]):
        kw, kb, key = jax.random.split(key, 3)
        bound = 1.0 / (fan_in ** 0.5)
        w = jax.random.uniform(kw, (fan_in, fan_out), jnp.float32, -bound, bound)
        b = jax.random.uniform(kb, (1, fan_out), jnp.float32, -bound, bound)
        params.append((w, b))
    return params


def pack_params(params, dtype=jnp.float32):
    """Zero-pad every feature dim to 128 lanes and pack:
       W1 -> (784,128), W2..W5 -> (4,128,128), biases -> (5,128)."""
    (w1, b1), *rest = params
    w1p = jnp.zeros((LAYER_SIZES[0], PAD), dtype).at[:, : w1.shape[1]].set(
        w1.astype(dtype))
    wpack = jnp.zeros((len(rest), PAD, PAD), dtype)
    bpack = jnp.zeros((len(params), PAD), dtype)
    bpack = bpack.at[0, : b1.shape[-1]].set(b1.reshape(-1).astype(dtype))
    for l, (w, b) in enumerate(rest):
        wpack = wpack.at[l, : w.shape[0], : w.shape[1]].set(w.astype(dtype))
        bpack = bpack.at[l + 1, : b.shape[-1]].set(b.reshape(-1).astype(dtype))
    return w1p, wpack, bpack


def net_v1_forward(x, packed_params, *, tb=128):
    """x: (B, 784) f32.  Returns (B, 10) f32 softmax probabilities.

    tb: batch tile (128 fills the v5e MXU; use 256 on v6e/v7x for max M)."""
    w1p, wpack, bpack = packed_params
    dtype = w1p.dtype
    B, D = x.shape

    TB = min(tb, _round_up(B, 8))          # small-batch friendly tile
    Bp = _round_up(B, TB)                  # pad batch to a whole number of tiles
    xp = x.astype(dtype)
    if Bp != B:
        xp = jnp.concatenate([xp, jnp.zeros((Bp - B, D), dtype)], axis=0)

    out = pl.pallas_call(
        mlp_kernel,
        out_shape=jax.ShapeDtypeStruct((Bp, PAD), jnp.float32),
        grid=(Bp // TB,),
        in_specs=[
            pl.BlockSpec((TB, D), lambda i: (i, 0)),          # batch-tiled x
            pl.BlockSpec((D, PAD), lambda i: (0, 0)),          # W1 resident
            pl.BlockSpec(wpack.shape, lambda i: (0, 0, 0)),    # W2..W5 resident
            pl.BlockSpec(bpack.shape, lambda i: (0, 0)),       # biases resident
        ],
        out_specs=pl.BlockSpec((TB, PAD), lambda i: (i, 0)),   # lane-dense out
        compiler_params=pltpu.CompilerParams(
            dimension_semantics=("parallel",),                 # megacore on v7x
        ),
    )(xp, w1p, wpack, bpack)

    return out[:B, :NUM_CLASSES]


def net_v1_reference(x, params):
    h = x
    for i, (w, b) in enumerate(params):
        h = h @ w + b
        if i < len(params) - 1:
            h = jnp.maximum(h, 0.0)
    return jax.nn.softmax(h, axis=1)


if __name__ == "__main__":
    key = jax.random.PRNGKey(0)
    kx, kp = jax.random.split(key)

    B = 8
    x = jax.random.normal(kx, (B, 1 * 28 * 28), jnp.float32)
    params = init_params(kp)
    ref = net_v1_reference(x, params)

    # f32 path: bit-tight check against the pure-JAX reference.
    packed_f32 = pack_params(params, jnp.float32)
    out = jax.block_until_ready(net_v1_forward(x, packed_f32))
    assert out.shape == (B, NUM_CLASSES)
    assert jnp.allclose(out, ref, atol=1e-5, rtol=1e-5), "f32 mismatch vs reference"
    assert jnp.allclose(jnp.sum(out, axis=1), 1.0, atol=1e-5), "softmax rows must sum to 1"

    # bf16-weight path (native MXU rate on v6e/v7x, f32 accumulate): loose check.
    packed_bf16 = pack_params(params, jnp.bfloat16)
    out_bf16 = jax.block_until_ready(net_v1_forward(x, packed_bf16))
    assert out_bf16.shape == (B, NUM_CLASSES)
    assert jnp.allclose(out_bf16, ref, atol=3e-2), "bf16 mismatch vs reference"
    assert jnp.allclose(jnp.sum(out_bf16, axis=1), 1.0, atol=5e-3), "bf16 softmax rows"

    print("KERNEL_OK")
</pallas_src>

<mosaic_0001>
module attributes {stable_mosaic.version = 11 : i64} {
  func.func @mlp_kernel(%arg0: i32, %arg1: memref<8x784xf32, #tpu.memory_space<vmem>>, %arg2: memref<784x128xf32, #tpu.memory_space<vmem>>, %arg3: memref<4x128x128xf32, #tpu.memory_space<vmem>>, %arg4: memref<5x128xf32, #tpu.memory_space<vmem>>, %arg5: memref<8x128xf32, #tpu.memory_space<vmem>>) attributes {dimension_semantics = [#tpu.dimension_semantics<parallel>], iteration_bounds = array<i64: 1>, scalar_prefetch = 0 : i64, scratch_operands = 0 : i64, tpu.core_type = #tpu.core_type<tc>, window_params = [{transform_indices = @transform_0, window_bounds = array<i64: 8, 784>}, {pipeline_mode = #tpu.pipeline_mode<synchronous>, transform_indices = @transform_1, window_bounds = array<i64: 784, 128>}, {pipeline_mode = #tpu.pipeline_mode<synchronous>, transform_indices = @transform_2, window_bounds = array<i64: 4, 128, 128>}, {pipeline_mode = #tpu.pipeline_mode<synchronous>, transform_indices = @transform_3, window_bounds = array<i64: 5, 128>}, {transform_indices = @transform_4, window_bounds = array<i64: 8, 128>}]} {
    %c0 = arith.constant 0 : index
    %c0_0 = arith.constant 0 : index
    %0 = vector.load %arg1[%c0, %c0_0] : memref<8x784xf32, #tpu.memory_space<vmem>>, vector<8x784xf32>
    %c0_1 = arith.constant 0 : index
    %c0_2 = arith.constant 0 : index
    %1 = vector.load %arg2[%c0_1, %c0_2] : memref<784x128xf32, #tpu.memory_space<vmem>>, vector<784x128xf32>
    %cst = arith.constant dense<0.000000e+00> : vector<8x128xf32>
    %2 = tpu.matmul %0, %1, %cst {dimension_numbers = #tpu.dot_dimension_numbers<[1], [0], [0], [1], [0, 0, 1, 1], [], []>} : vector<8x784xf32>, vector<784x128xf32>, vector<8x128xf32> -> vector<8x128xf32>
    %c0_3 = arith.constant 0 : index
    %c0_4 = arith.constant 0 : index
    %3 = vector.load %arg4[%c0_3, %c0_4] : memref<5x128xf32, #tpu.memory_space<vmem>>, vector<1x128xf32>
    %4 = vector.broadcast %3 : vector<1x128xf32> to vector<8x128xf32>
    %5 = arith.addf %2, %4 : vector<8x128xf32>
    %cst_5 = arith.constant 0.000000e+00 : f32
    %6 = vector.broadcast %cst_5 : f32 to vector<8x128xf32>
    %7 = arith.maximumf %5, %6 : vector<8x128xf32>
    %c0_6 = arith.constant 0 : index
    %c0_7 = arith.constant 0 : index
    %c0_8 = arith.constant 0 : index
    %8 = vector.load %arg3[%c0_6, %c0_7, %c0_8] : memref<4x128x128xf32, #tpu.memory_space<vmem>>, vector<1x128x128xf32>
    %9 = vector.shape_cast %8 : vector<1x128x128xf32> to vector<128x128xf32>
    %cst_9 = arith.constant dense<0.000000e+00> : vector<8x128xf32>
    %10 = tpu.matmul %7, %9, %cst_9 {dimension_numbers = #tpu.dot_dimension_numbers<[1], [0], [0], [1], [0, 0, 1, 1], [], []>} : vector<8x128xf32>, vector<128x128xf32>, vector<8x128xf32> -> vector<8x128xf32>
    %c1 = arith.constant 1 : index
    %c0_10 = arith.constant 0 : index
    %11 = vector.load %arg4[%c1, %c0_10] : memref<5x128xf32, #tpu.memory_space<vmem>>, vector<1x128xf32>
    %12 = vector.broadcast %11 : vector<1x128xf32> to vector<8x128xf32>
    %13 = arith.addf %10, %12 : vector<8x128xf32>
    %cst_11 = arith.constant 0.000000e+00 : f32
    %14 = vector.broadcast %cst_11 : f32 to vector<8x128xf32>
    %15 = arith.maximumf %13, %14 : vector<8x128xf32>
    %c1_12 = arith.constant 1 : index
    %c0_13 = arith.constant 0 : index
    %c0_14 = arith.constant 0 : index
    %16 = vector.load %arg3[%c1_12, %c0_13, %c0_14] : memref<4x128x128xf32, #tpu.memory_space<vmem>>, vector<1x128x128xf32>
    %17 = vector.shape_cast %16 : vector<1x128x128xf32> to vector<128x128xf32>
    %cst_15 = arith.constant dense<0.000000e+00> : vector<8x128xf32>
    %18 = tpu.matmul %15, %17, %cst_15 {dimension_numbers = #tpu.dot_dimension_numbers<[1], [0], [0], [1], [0, 0, 1, 1], [], []>} : vector<8x128xf32>, vector<128x128xf32>, vector<8x128xf32> -> vector<8x128xf32>
    %c2 = arith.constant 2 : index
    %c0_16 = arith.constant 0 : index
    %19 = vector.load %arg4[%c2, %c0_16] : memref<5x128xf32, #tpu.memory_space<vmem>>, vector<1x128xf32>
    %20 = vector.broadcast %19 : vector<1x128xf32> to vector<8x128xf32>
    %21 = arith.addf %18, %20 : vector<8x128xf32>
    %cst_17 = arith.constant 0.000000e+00 : f32
    %22 = vector.broadcast %cst_17 : f32 to vector<8x128xf32>
    %23 = arith.maximumf %21, %22 : vector<8x128xf32>
    %c2_18 = arith.constant 2 : index
    %c0_19 = arith.constant 0 : index
    %c0_20 = arith.constant 0 : index
    %24 = vector.load %arg3[%c2_18, %c0_19, %c0_20] : memref<4x128x128xf32, #tpu.memory_space<vmem>>, vector<1x128x128xf32>
    %25 = vector.shape_cast %24 : vector<1x128x128xf32> to vector<128x128xf32>
    %cst_21 = arith.constant dense<0.000000e+00> : vector<8x128xf32>
    %26 = tpu.matmul %23, %25, %cst_21 {dimension_numbers = #tpu.dot_dimension_numbers<[1], [0], [0], [1], [0, 0, 1, 1], [], []>} : vector<8x128xf32>, vector<128x128xf32>, vector<8x128xf32> -> vector<8x128xf32>
    %c3 = arith.constant 3 : index
    %c0_22 = arith.constant 0 : index
    %27 = vector.load %arg4[%c3, %c0_22] : memref<5x128xf32, #tpu.memory_space<vmem>>, vector<1x128xf32>
    %28 = vector.broadcast %27 : vector<1x128xf32> to vector<8x128xf32>
    %29 = arith.addf %26, %28 : vector<8x128xf32>
    %cst_23 = arith.constant 0.000000e+00 : f32
    %30 = vector.broadcast %cst_23 : f32 to vector<8x128xf32>
    %31 = arith.maximumf %29, %30 : vector<8x128xf32>
    %c3_24 = arith.constant 3 : index
    %c0_25 = arith.constant 0 : index
    %c0_26 = arith.constant 0 : index
    %32 = vector.load %arg3[%c3_24, %c0_25, %c0_26] : memref<4x128x128xf32, #tpu.memory_space<vmem>>, vector<1x128x128xf32>
    %33 = vector.shape_cast %32 : vector<1x128x128xf32> to vector<128x128xf32>
    %cst_27 = arith.constant dense<0.000000e+00> : vector<8x128xf32>
    %34 = tpu.matmul %31, %33, %cst_27 {dimension_numbers = #tpu.dot_dimension_numbers<[1], [0], [0], [1], [0, 0, 1, 1], [], []>} : vector<8x128xf32>, vector<128x128xf32>, vector<8x128xf32> -> vector<8x128xf32>
    %c4 = arith.constant 4 : index
    %c0_28 = arith.constant 0 : index
    %35 = vector.load %arg4[%c4, %c0_28] : memref<5x128xf32, #tpu.memory_space<vmem>>, vector<1x128xf32>
    %36 = vector.broadcast %35 : vector<1x128xf32> to vector<8x128xf32>
    %37 = arith.addf %34, %36 : vector<8x128xf32>
    %38 = tpu.iota {dimensions = array<i32: 1>} : vector<8x128xi32>
    %c10_i32 = arith.constant 10 : i32
    %39 = vector.broadcast %c10_i32 : i32 to vector<8x128xi32>
    %40 = arith.cmpi slt, %38, %39 : vector<8x128xi32>
    %cst_29 = arith.constant 0xFF800000 : f32
    %41 = vector.broadcast %cst_29 : f32 to vector<8x128xf32>
    %42 = arith.select %40, %37, %41 : vector<8x128xi1>, vector<8x128xf32>
    %cst_30 = arith.constant dense<0xFF800000> : vector<8xf32>
    %43 = vector.multi_reduction <maximumf>, %42, %cst_30 [1] : vector<8x128xf32> to vector<8xf32>
    %44 = vector.shape_cast %43 : vector<8xf32> to vector<8x1xf32>
    %45 = vector.broadcast %44 : vector<8x1xf32> to vector<8x128xf32>
    %46 = arith.subf %42, %45 : vector<8x128xf32>
    %47 = math.exp %46 : vector<8x128xf32>
    %cst_31 = arith.constant dense<0.000000e+00> : vector<8xf32>
    %48 = vector.multi_reduction <add>, %47, %cst_31 [1] : vector<8x128xf32> to vector<8xf32>
    %49 = vector.shape_cast %48 : vector<8xf32> to vector<8x1xf32>
    %cst_32 = arith.constant 1.000000e+00 : f32
    %50 = vector.broadcast %cst_32 : f32 to vector<8x1xf32>
    %51 = arith.divf %50, %49 : vector<8x1xf32>
    %52 = vector.broadcast %51 : vector<8x1xf32> to vector<8x128xf32>
    %53 = arith.mulf %47, %52 : vector<8x128xf32>
    %c0_33 = arith.constant 0 : index
    %c0_34 = arith.constant 0 : index
    %54 = vector.load %arg5[%c0_33, %c0_34] : memref<8x128xf32, #tpu.memory_space<vmem>>, vector<8x128xf32>
    tpu.vector_store %arg5[%c0_33, %c0_34], %53 {strides = array<i32>} : memref<8x128xf32, #tpu.memory_space<vmem>>, vector<8x128xf32>,
    return
  }
  func.func @transform_0(%arg0: i32) -> (i32, i32) {
    %c0_i32 = arith.constant 0 : i32
    %c0_i32_0 = arith.constant 0 : i32
    return %arg0, %c0_i32 : i32, i32
  }
  func.func @transform_1(%arg0: i32) -> (i32, i32) {
    %c0_i32 = arith.constant 0 : i32
    %c0_i32_0 = arith.constant 0 : i32
    %c0_i32_1 = arith.constant 0 : i32
    return %c0_i32, %c0_i32_0 : i32, i32
  }
  func.func @transform_2(%arg0: i32) -> (i32, i32, i32) {
    %c0_i32 = arith.constant 0 : i32
    %c0_i32_0 = arith.constant 0 : i32
    %c0_i32_1 = arith.constant 0 : i32
    %c0_i32_2 = arith.constant 0 : i32
    return %c0_i32, %c0_i32_0, %c0_i32_1 : i32, i32, i32
  }
  func.func @transform_3(%arg0: i32) -> (i32, i32) {
    %c0_i32 = arith.constant 0 : i32
    %c0_i32_0 = arith.constant 0 : i32
    %c0_i32_1 = arith.constant 0 : i32
    return %c0_i32, %c0_i32_0 : i32, i32
  }
  func.func @transform_4(%arg0: i32) -> (i32, i32) {
    %c0_i32 = arith.constant 0 : i32
    %c0_i32_0 = arith.constant 0 : i32
    return %arg0, %c0_i32 : i32, i32
  }
}

</mosaic_0001>

<llo_original>
// kernel: tpu_custom_call.1
$region0: #{tpu_custom_call.1}
  #allocation0 [shape = 'u32[]', space=smem, size = 0x4, offset = 0x4, fixed_abs, tag = 'smem constant byte address 0x4 - core index']
  #allocation1 [shape = 'u32[144,128]{1,0:T(1,128)}', space=vmem, size = 0x12000, scoped, tag = 'internal scratch']
  %s0 = inlined_call_operand.hbm [shape: f32[8,784], index: 0, kind: input, shape index: {}]
  %s1 = inlined_call_operand.hbm [shape: f32[784,128], index: 1, kind: input, shape index: {}]
  %s2 = inlined_call_operand.hbm [shape: f32[4,128,128], index: 2, kind: input, shape index: {}]
  %s3 = inlined_call_operand.vmem [shape: f32[5,128], index: 3, kind: input, shape index: {}]
  %s4 = inlined_call_operand.hbm [shape: f32[8,128], index: 4, kind: output, shape index: {}]
  %s5 = sld [smem:[#allocation0]]
  $region38: #{tpu_custom_call.1} parent=0
    _
  %s7 = ssub.s32 1, %s5
  %s8 = scalar_select 0, %s7, %s5
  $region1: #{tpu_custom_call.1} parent=0
    #allocation2 [shape = 'u8[28672]{0}', space=vmem, size = 0x7000, scoped, tag = 'input window, operand 0, single buffered']
    #allocation3 [shape = 's32[1]{0}', space=sflag, size = 0x4, scoped, tag = 'scoped memory for tpu_custom_call.1']
    #allocation4 [shape = 's32[1]{0}', space=sflag, size = 0x4, scoped, tag = 'scoped memory for tpu_custom_call.1']
    #allocation5 [shape = 'u8[401408]{0}', space=vmem, size = 0x62000, scoped, tag = 'input window, operand 1, single buffered']
    #allocation6 [shape = 's32[1]{0}', space=sflag, size = 0x4, scoped, tag = 'scoped memory for tpu_custom_call.1']
    #allocation7 [shape = 'u8[262144]{0}', space=vmem, size = 0x40000, scoped, tag = 'input window, operand 2, single buffered']
    #allocation8 [shape = 'u8[4096]{0}', space=vmem, size = 0x1000, scoped, tag = 'output window, operand 0, single buffered']
    %9 = vsyncpa [#allocation3], 0
    %10 = vsyncpa [#allocation6], 0
    %11 = vsyncpa [#allocation4], 0
    // Predicated region
    $region2: #{tpu_custom_call.1} parent=1 // pred_check
      _
    $region3: #{tpu_custom_call.1} parent=1 // pred_check_branch
      %13 = sbr.rel (0) target = $region5
    $region4: #{tpu_custom_call.1} parent=1 // pred_region
      %s15 = ssub.s32 896, 896
      %16 = vsyncadd [#allocation3], %s15
      %s18 = sshll.u32 [#allocation2], 4
      %s19 = int_to_ptr.vmem [resolvable:$true] %s18
      %21 = dma.hbm_to_vmem [thread:$0]  %s0, 896, %s19, [#allocation3]
    $region5: #{tpu_custom_call.1} parent=1 // pred_fallthru
      _
    // Predicated region
    $region6: #{tpu_custom_call.1} parent=1 // pred_check
      _
    $region7: #{tpu_custom_call.1} parent=1 // pred_check_branch
      %23 = sbr.rel (0) target = $region9
    $region8: #{tpu_custom_call.1} parent=1 // pred_region
      %s25 = ssub.s32 12544, 12544
      %26 = vsyncadd [#allocation6], %s25
      %s27 = sshll.u32 [#allocation5], 4
      %s28 = int_to_ptr.vmem [resolvable:$true] %s27
      %33 = dma.hbm_to_vmem [thread:$0]  %s1, 12544, %s28, [#allocation6], 128, 128, 8
    $region9: #{tpu_custom_call.1} parent=1 // pred_fallthru
      _
    // Predicated region
    $region10: #{tpu_custom_call.1} parent=1 // pred_check
      _
    $region11: #{tpu_custom_call.1} parent=1 // pred_check_branch
      %35 = sbr.rel (0) target = $region13
    $region12: #{tpu_custom_call.1} parent=1 // pred_region
      %s37 = ssub.s32 8192, 8192
      %38 = vsyncadd [#allocation6], %s37
      %s39 = sshll.u32 [#allocation7], 4
      %s40 = int_to_ptr.vmem [resolvable:$true] %s39
      %45 = dma.hbm_to_vmem [thread:$0]  %s2, 8192, %s40, [#allocation6], 128, 128, 8
    $region13: #{tpu_custom_call.1} parent=1 // pred_fallthru
      _
    // Predicated region
    $region14: #{tpu_custom_call.1} parent=1 // pred_check
      _
    $region15: #{tpu_custom_call.1} parent=1 // pred_check_branch
      %47 = sbr.rel (0) target = $region17
    $region16: #{tpu_custom_call.1} parent=1 // pred_region
      _
    $region17: #{tpu_custom_call.1} parent=1 // pred_fallthru
      _
    // Predicated region
    $region18: #{tpu_custom_call.1} parent=1 // pred_check
      _
    $region19: #{tpu_custom_call.1} parent=1 // pred_check_branch
      %49 = sbr.rel (0) target = $region21
    $region20: #{tpu_custom_call.1} parent=1 // pred_region
      %50 = dma.done [#allocation3], 896
    $region21: #{tpu_custom_call.1} parent=1 // pred_fallthru
      _
    // Predicated region
    $region22: #{tpu_custom_call.1} parent=1 // pred_check
      _
    $region23: #{tpu_custom_call.1} parent=1 // pred_check_branch
      %52 = sbr.rel (0) target = $region25
    $region24: #{tpu_custom_call.1} parent=1 // pred_region
      %53 = dma.done [#allocation6], 12544
    $region25: #{tpu_custom_call.1} parent=1 // pred_fallthru
      _
    // Predicated region
    $region26: #{tpu_custom_call.1} parent=1 // pred_check
      _
    $region27: #{tpu_custom_call.1} parent=1 // pred_check_branch
      %55 = sbr.rel (0) target = $region29
    $region28: #{tpu_custom_call.1} parent=1 // pred_region
      %56 = dma.done [#allocation6], 8192
    $region29: #{tpu_custom_call.1} parent=1 // pred_fallthru
      _
    %v57 = vld [vmem:[#allocation2] sm:$0xff]
    %v58 = vld [vmem:[#allocation2 + $0x8] sm:$0xff]
    %v59 = vld [vmem:[#allocation2 + $0x10] sm:$0xff]
    %v60 = vld [vmem:[#allocation2 + $0x18] sm:$0xff]
    %v61 = vld [vmem:[#allocation2 + $0x20] sm:$0xff]
    %v62 = vld [vmem:[#allocation2 + $0x28] sm:$0xff]
    %v63 = vld [vmem:[#allocation2 + $0x30] sm:$0xff]
    %v64 = vld [vmem:[#allocation5] sm:$0xff]
    %v65 = vld [vmem:[#allocation5 + $0x8] sm:$0xff]
    %v66 = vld [vmem:[#allocation5 + $0x10] sm:$0xff]
    %v67 = vld [vmem:[#allocation5 + $0x18] sm:$0xff]
    %v68 = vld [vmem:[#allocation5 + $0x20] sm:$0xff]
    %v69 = vld [vmem:[#allocation5 + $0x28] sm:$0xff]
    %v70 = vld [vmem:[#allocation5 + $0x30] sm:$0xff]
    %v71 = vld [vmem:[#allocation5 + $0x38] sm:$0xff]
    %v72 = vld [vmem:[#allocation5 + $0x40] sm:$0xff]
    %v73 = vld [vmem:[#allocation5 + $0x48] sm:$0xff]
    %v74 = vld [vmem:[#allocation5 + $0x50] sm:$0xff]
    %v75 = vld [vmem:[#allocation5 + $0x58] sm:$0xff]
    %v76 = vld [vmem:[#allocation5 + $0x60] sm:$0xff]
    %v77 = vld [vmem:[#allocation5 + $0x68] sm:$0xff]
    %v78 = vld [vmem:[#allocation5 + $0x70] sm:$0xff]
    %v79 = vld [vmem:[#allocation5 + $0x78] sm:$0xff]
    %v80 = vld [vmem:[#allocation5 + $0x80] sm:$0xff]
    %v81 = vld [vmem:[#allocation5 + $0x88] sm:$0xff]
    %v82 = vld [vmem:[#allocation5 + $0x90] sm:$0xff]
    %v83 = vld [vmem:[#allocation5 + $0x98] sm:$0xff]
    %v84 = vld [vmem:[#allocation5 + $0xa0] sm:$0xff]
    %v85 = vld [vmem:[#allocation5 + $0xa8] sm:$0xff]
    %v86 = vld [vmem:[#allocation5 + $0xb0] sm:$0xff]
    %v87 = vld [vmem:[#allocation5 + $0xb8] sm:$0xff]
    %v88 = vld [vmem:[#allocation5 + $0xc0] sm:$0xff]
    %v89 = vld [vmem:[#allocation5 + $0xc8] sm:$0xff]
    %v90 = vld [vmem:[#allocation5 + $0xd0] sm:$0xff]
    %v91 = vld [vmem:[#allocation5 + $0xd8] sm:$0xff]
    %v92 = vld [vmem:[#allocation5 + $0xe0] sm:$0xff]
    %v93 = vld [vmem:[#allocation5 + $0xe8] sm:$0xff]
    %v94 = vld [vmem:[#allocation5 + $0xf0] sm:$0xff]
    %v95 = vld [vmem:[#allocation5 + $0xf8] sm:$0xff]
    %v96 = vld [vmem:[#allocation5 + $0x100] sm:$0xff]
    %v97 = vld [vmem:[#allocation5 + $0x108] sm:$0xff]
    %v98 = vld [vmem:[#allocation5 + $0x110] sm:$0xff]
    %v99 = vld [vmem:[#allocation5 + $0x118] sm:$0xff]
    %v100 = vld [vmem:[#allocation5 + $0x120] sm:$0xff]
    %v101 = vld [vmem:[#allocation5 + $0x128] sm:$0xff]
    %v102 = vld [vmem:[#allocation5 + $0x130] sm:$0xff]
    %v103 = vld [vmem:[#allocation5 + $0x138] sm:$0xff]
    %v104 = vld [vmem:[#allocation5 + $0x140] sm:$0xff]
    %v105 = vld [vmem:[#allocation5 + $0x148] sm:$0xff]
    %v106 = vld [vmem:[#allocation5 + $0x150] sm:$0xff]
    %v107 = vld [vmem:[#allocation5 + $0x158] sm:$0xff]
    %v108 = vld [vmem:[#allocation5 + $0x160] sm:$0xff]
    %v109 = vld [vmem:[#allocation5 + $0x168] sm:$0xff]
    %v110 = vld [vmem:[#allocation5 + $0x170] sm:$0xff]
    %v111 = vld [vmem:[#allocation5 + $0x178] sm:$0xff]
    %v112 = vld [vmem:[#allocation5 + $0x180] sm:$0xff]
    %v113 = vld [vmem:[#allocation5 + $0x188] sm:$0xff]
    %v114 = vld [vmem:[#allocation5 + $0x190] sm:$0xff]
    %v115 = vld [vmem:[#allocation5 + $0x198] sm:$0xff]
    %v116 = vld [vmem:[#allocation5 + $0x1a0] sm:$0xff]
    %v117 = vld [vmem:[#allocation5 + $0x1a8] sm:$0xff]
    %v118 = vld [vmem:[#allocation5 + $0x1b0] sm:$0xff]
    %v119 = vld [vmem:[#allocation5 + $0x1b8] sm:$0xff]
    %v120 = vld [vmem:[#allocation5 + $0x1c0] sm:$0xff]
    %v121 = vld [vmem:[#allocation5 + $0x1c8] sm:$0xff]
    %v122 = vld [vmem:[#allocation5 + $0x1d0] sm:$0xff]
    %v123 = vld [vmem:[#allocation5 + $0x1d8] sm:$0xff]
    %v124 = vld [vmem:[#allocation5 + $0x1e0] sm:$0xff]
    %v125 = vld [vmem:[#allocation5 + $0x1e8] sm:$0xff]
    %v126 = vld [vmem:[#allocation5 + $0x1f0] sm:$0xff]
    %v127 = vld [vmem:[#allocation5 + $0x1f8] sm:$0xff]
    %v128 = vld [vmem:[#allocation5 + $0x200] sm:$0xff]
    %v129 = vld [vmem:[#allocation5 + $0x208] sm:$0xff]
    %v130 = vld [vmem:[#allocation5 + $0x210] sm:$0xff]
    %v131 = vld [vmem:[#allocation5 + $0x218] sm:$0xff]
    %v132 = vld [vmem:[#allocation5 + $0x220] sm:$0xff]
    %v133 = vld [vmem:[#allocation5 + $0x228] sm:$0xff]
    %v134 = vld [vmem:[#allocation5 + $0x230] sm:$0xff]
    %v135 = vld [vmem:[#allocation5 + $0x238] sm:$0xff]
    %v136 = vld [vmem:[#allocation5 + $0x240] sm:$0xff]
    %v137 = vld [vmem:[#allocation5 + $0x248] sm:$0xff]
    %v138 = vld [vmem:[#allocation5 + $0x250] sm:$0xff]
    %v139 = vld [vmem:[#allocation5 + $0x258] sm:$0xff]
    %v140 = vld [vmem:[#allocation5 + $0x260] sm:$0xff]
    %v141 = vld [vmem:[#allocation5 + $0x268] sm:$0xff]
    %v142 = vld [vmem:[#allocation5 + $0x270] sm:$0xff]
    %v143 = vld [vmem:[#allocation5 + $0x278] sm:$0xff]
    %v144 = vld [vmem:[#allocation5 + $0x280] sm:$0xff]
    %v145 = vld [vmem:[#allocation5 + $0x288] sm:$0xff]
    %v146 = vld [vmem:[#allocation5 + $0x290] sm:$0xff]
    %v147 = vld [vmem:[#allocation5 + $0x298] sm:$0xff]
    %v148 = vld [vmem:[#allocation5 + $0x2a0] sm:$0xff]
    %v149 = vld [vmem:[#allocation5 + $0x2a8] sm:$0xff]
    %v150 = vld [vmem:[#allocation5 + $0x2b0] sm:$0xff]
    %v151 = vld [vmem:[#allocation5 + $0x2b8] sm:$0xff]
    %v152 = vld [vmem:[#allocation5 + $0x2c0] sm:$0xff]
    %v153 = vld [vmem:[#allocation5 + $0x2c8] sm:$0xff]
    %v154 = vld [vmem:[#allocation5 + $0x2d0] sm:$0xff]
    %v155 = vld [vmem:[#allocation5 + $0x2d8] sm:$0xff]
    %v156 = vld [vmem:[#allocation5 + $0x2e0] sm:$0xff]
    %v157 = vld [vmem:[#allocation5 + $0x2e8] sm:$0xff]
    %v158 = vld [vmem:[#allocation5 + $0x2f0] sm:$0xff]
    %v159 = vld [vmem:[#allocation5 + $0x2f8] sm:$0xff]
    %v160 = vld [vmem:[#allocation5 + $0x300] sm:$0xff]
    %v161 = vld [vmem:[#allocation5 + $0x308] sm:$0xff]
    %v162 = vld [vmem:[%s3] sm:$0x1]
    %v163 = vlaneseq
    %v164 = vshrl.u32 %v163, 7
    %v165 = vsub.s32 0, %v164
    %v166 = vrot.slane %v162, %v165
    %vm167 = vcmask 130048
    %v169 = vsel %vm167, %v63, 0
    %171 = vmatprep.subr.mxu0 0.0
    %172 = vmatpush1.msra.mxu0 %v64
    %173 = vmatprep.subr.mxu0 0.0
    %174 = vmatpush1.msra.mxu0 %v65
    %175 = vmatprep.subr.mxu0 0.0
    %176 = vmatpush1.msra.mxu0 %v66
    %177 = vmatprep.subr.mxu0 0.0
    %178 = vmatpush1.msra.mxu0 %v67
    %179 = vmatprep.subr.mxu0 0.0
    %180 = vmatpush1.msra.mxu0 %v68
    %181 = vmatprep.subr.mxu0 0.0
    %182 = vmatpush1.msra.mxu0 %v69
    %183 = vmatprep.subr.mxu0 0.0
    %184 = vmatpush1.msra.mxu0 %v70
    %185 = vmatprep.subr.mxu0 0.0
    %186 = vmatpush1.msra.mxu0 %v71
    %187 = vmatprep.subr.mxu0 0.0
    %188 = vmatpush1.msra.mxu0 %v72
    %189 = vmatprep.subr.mxu0 0.0
    %190 = vmatpush1.msra.mxu0 %v73
    %191 = vmatprep.subr.mxu0 0.0
    %192 = vmatpush1.msra.mxu0 %v74
    %193 = vmatprep.subr.mxu0 0.0
    %194 = vmatpush1.msra.mxu0 %v75
    %195 = vmatprep.subr.mxu0 0.0
    %196 = vmatpush1.msra.mxu0 %v76
    %197 = vmatprep.subr.mxu0 0.0
    %198 = vmatpush1.msra.mxu0 %v77
    %199 = vmatprep.subr.mxu0 0.0
    %200 = vmatpush1.msra.mxu0 %v78
    %201 = vmatprep.subr.mxu0 0.0
    %202 = vmatpush1.msra.mxu0 %v79
    %203 = vmatprep.subr.mxu0 0.0
    %204 = vmatpush1.msra.mxu0 %v80
    %205 = vmatprep.subr.mxu0 0.0
    %206 = vmatpush1.msra.mxu0 %v81
    %207 = vmatprep.subr.mxu0 0.0
    %208 = vmatpush1.msra.mxu0 %v82
    %209 = vmatprep.subr.mxu0 0.0
    %210 = vmatpush1.msra.mxu0 %v83
    %211 = vmatprep.subr.mxu0 0.0
    %212 = vmatpush1.msra.mxu0 %v84
    %213 = vmatprep.subr.mxu0 0.0
    %214 = vmatpush1.msra.mxu0 %v85
    %215 = vmatprep.subr.mxu0 0.0
    %216 = vmatpush1.msra.mxu0 %v86
    %217 = vmatprep.subr.mxu0 0.0
    %218 = vmatpush1.msra.mxu0 %v87
    %219 = vmatprep.subr.mxu0 0.0
    %220 = vmatpush1.msra.mxu0 %v88
    %221 = vmatprep.subr.mxu0 0.0
    %222 = vmatpush1.msra.mxu0 %v89
    %223 = vmatprep.subr.mxu0 0.0
    %224 = vmatpush1.msra.mxu0 %v90
    %225 = vmatprep.subr.mxu0 0.0
    %226 = vmatpush1.msra.mxu0 %v91
    %227 = vmatprep.subr.mxu0 0.0
    %228 = vmatpush1.msra.mxu0 %v92
    %229 = vmatprep.subr.mxu0 0.0
    %230 = vmatpush1.msra.mxu0 %v93
    %231 = vmatprep.subr.mxu0 0.0
    %232 = vmatpush1.msra.mxu0 %v94
    %233 = vmatprep.subr.mxu0 0.0
    %234 = vmatpush1.msra.mxu0 %v95
    %235 = vmatprep.mubr.f32.mxu0 %v58
    %236 = vmatmul.mubr.f32.gmra.mrb[0].mxu0 %v57
    %v237 = vpop.f32.mrb[0].mxu0
    %v238 = vadd.f32 %v166, %v237
    %v239 = vpop.f32.mrb[0].mxu0
    %240 = vdwg.mxu0
    %241 = vmatprep.subr.mxu0 0.0
    %242 = vmatpush1.msra.mxu0 %v96
    %243 = vmatprep.subr.mxu0 0.0
    %244 = vmatpush1.msra.mxu0 %v97
    %245 = vmatprep.subr.mxu0 0.0
    %246 = vmatpush1.msra.mxu0 %v98
    %247 = vmatprep.subr.mxu0 0.0
    %248 = vmatpush1.msra.mxu0 %v99
    %249 = vmatprep.subr.mxu0 0.0
    %250 = vmatpush1.msra.mxu0 %v100
    %251 = vmatprep.subr.mxu0 0.0
    %252 = vmatpush1.msra.mxu0 %v101
    %253 = vmatprep.subr.mxu0 0.0
    %254 = vmatpush1.msra.mxu0 %v102
    %255 = vmatprep.subr.mxu0 0.0
    %256 = vmatpush1.msra.mxu0 %v103
    %257 = vmatprep.subr.mxu0 0.0
    %258 = vmatpush1.msra.mxu0 %v104
    %259 = vmatprep.subr.mxu0 0.0
    %260 = vmatpush1.msra.mxu0 %v105
    %261 = vmatprep.subr.mxu0 0.0
    %262 = vmatpush1.msra.mxu0 %v106
    %263 = vmatprep.subr.mxu0 0.0
    %264 = vmatpush1.msra.mxu0 %v107
    %265 = vmatprep.subr.mxu0 0.0
    %266 = vmatpush1.msra.mxu0 %v108
    %267 = vmatprep.subr.mxu0 0.0
    %268 = vmatpush1.msra.mxu0 %v109
    %269 = vmatprep.subr.mxu0 0.0
    %270 = vmatpush1.msra.mxu0 %v110
    %271 = vmatprep.subr.mxu0 0.0
    %272 = vmatpush1.msra.mxu0 %v111
    %273 = vmatprep.subr.mxu0 0.0
    %274 = vmatpush1.msra.mxu0 %v112
    %275 = vmatprep.subr.mxu0 0.0
    %276 = vmatpush1.msra.mxu0 %v113
    %277 = vmatprep.subr.mxu0 0.0
    %278 = vmatpush1.msra.mxu0 %v114
    %279 = vmatprep.subr.mxu0 0.0
    %280 = vmatpush1.msra.mxu0 %v115
    %281 = vmatprep.subr.mxu0 0.0
    %282 = vmatpush1.msra.mxu0 %v116
    %283 = vmatprep.subr.mxu0 0.0
    %284 = vmatpush1.msra.mxu0 %v117
    %285 = vmatprep.subr.mxu0 0.0
    %286 = vmatpush1.msra.mxu0 %v118
    %287 = vmatprep.subr.mxu0 0.0
    %288 = vmatpush1.msra.mxu0 %v119
    %289 = vmatprep.subr.mxu0 0.0
    %290 = vmatpush1.msra.mxu0 %v120
    %291 = vmatprep.subr.mxu0 0.0
    %292 = vmatpush1.msra.mxu0 %v121
    %293 = vmatprep.subr.mxu0 0.0
    %294 = vmatpush1.msra.mxu0 %v122
    %295 = vmatprep.subr.mxu0 0.0
    %296 = vmatpush1.msra.mxu0 %v123
    %297 = vmatprep.subr.mxu0 0.0
    %298 = vmatpush1.msra.mxu0 %v124
    %299 = vmatprep.subr.mxu0 0.0
    %300 = vmatpush1.msra.mxu0 %v125
    %301 = vmatprep.subr.mxu0 0.0
    %302 = vmatpush1.msra.mxu0 %v126
    %303 = vmatprep.subr.mxu0 0.0
    %304 = vmatpush1.msra.mxu0 %v127
    %305 = vmatprep.mubr.f32.mxu0 %v60
    %306 = vmatmul.mubr.f32.gmra.mrb[0].mxu0 %v59
    %v307 = vpop.f32.mrb[0].mxu0
    %v308 = vadd.f32 %v238, %v307
    %v309 = vpop.f32.mrb[0].mxu0
    %310 = vdwg.mxu0
    %311 = vmatprep.subr.mxu0 0.0
    %312 = vmatpush1.msra.mxu0 %v128
    %313 = vmatprep.subr.mxu0 0.0
    %314 = vmatpush1.msra.mxu0 %v129
    %315 = vmatprep.subr.mxu0 0.0
    %316 = vmatpush1.msra.mxu0 %v130
    %317 = vmatprep.subr.mxu0 0.0
    %318 = vmatpush1.msra.mxu0 %v131
    %319 = vmatprep.subr.mxu0 0.0
    %320 = vmatpush1.msra.mxu0 %v132
    %321 = vmatprep.subr.mxu0 0.0
    %322 = vmatpush1.msra.mxu0 %v133
    %323 = vmatprep.subr.mxu0 0.0
    %324 = vmatpush1.msra.mxu0 %v134
    %325 = vmatprep.subr.mxu0 0.0
    %326 = vmatpush1.msra.mxu0 %v135
    %327 = vmatprep.subr.mxu0 0.0
    %328 = vmatpush1.msra.mxu0 %v136
    %329 = vmatprep.subr.mxu0 0.0
    %330 = vmatpush1.msra.mxu0 %v137
    %331 = vmatprep.subr.mxu0 0.0
    %332 = vmatpush1.msra.mxu0 %v138
    %333 = vmatprep.subr.mxu0 0.0
    %334 = vmatpush1.msra.mxu0 %v139
    %335 = vmatprep.subr.mxu0 0.0
    %336 = vmatpush1.msra.mxu0 %v140
    %337 = vmatprep.subr.mxu0 0.0
    %338 = vmatpush1.msra.mxu0 %v141
    %339 = vmatprep.subr.mxu0 0.0
    %340 = vmatpush1.msra.mxu0 %v142
    %341 = vmatprep.subr.mxu0 0.0
    %342 = vmatpush1.msra.mxu0 %v143
    %343 = vmatprep.subr.mxu0 0.0
    %344 = vmatpush1.msra.mxu0 %v144
    %345 = vmatprep.subr.mxu0 0.0
    %346 = vmatpush1.msra.mxu0 %v145
    %347 = vmatprep.subr.mxu0 0.0
    %348 = vmatpush1.msra.mxu0 %v146
    %349 = vmatprep.subr.mxu0 0.0
    %350 = vmatpush1.msra.mxu0 %v147
    %351 = vmatprep.subr.mxu0 0.0
    %352 = vmatpush1.msra.mxu0 %v148
    %353 = vmatprep.subr.mxu0 0.0
    %354 = vmatpush1.msra.mxu0 %v149
    %355 = vmatprep.subr.mxu0 0.0
    %356 = vmatpush1.msra.mxu0 %v150
    %357 = vmatprep.subr.mxu0 0.0
    %358 = vmatpush1.msra.mxu0 %v151
    %359 = vmatprep.subr.mxu0 0.0
    %360 = vmatpush1.msra.mxu0 %v152
    %361 = vmatprep.subr.mxu0 0.0
    %362 = vmatpush1.msra.mxu0 %v153
    %363 = vmatprep.subr.mxu0 0.0
    %364 = vmatpush1.msra.mxu0 %v154
    %365 = vmatprep.subr.mxu0 0.0
    %366 = vmatpush1.msra.mxu0 %v155
    %367 = vmatprep.subr.mxu0 0.0
    %368 = vmatpush1.msra.mxu0 %v156
    %369 = vmatprep.subr.mxu0 0.0
    %370 = vmatpush1.msra.mxu0 %v157
    %371 = vmatprep.subr.mxu0 0.0
    %372 = vmatpush1.msra.mxu0 %v158
    %373 = vmatprep.subr.mxu0 0.0
    %374 = vmatpush1.msra.mxu0 %v159
    %375 = vmatprep.mubr.f32.mxu0 %v62
    %376 = vmatmul.mubr.f32.gmra.mrb[0].mxu0 %v61
    %v377 = vpop.f32.mrb[0].mxu0
    %v378 = vadd.f32 %v308, %v377
    %v379 = vpop.f32.mrb[0].mxu0
    %380 = vdwg.mxu0
    %381 = vmatprep.subr.mxu0 0.0
    %382 = vmatpush1.msra.mxu0 %v160
    %383 = vmatprep.subr.mxu0 0.0
    %384 = vmatpush1.msra.mxu0 %v161
    %385 = vmatprep.subr.mxu0 0.0
    %386 = vmatpush1.msra.mxu0 0.0
    %387 = vmatprep.subr.mxu0 0.0
    %388 = vmatpush1.msra.mxu0 0.0
    %389 = vmatprep.subr.mxu0 0.0
    %390 = vmatpush1.msra.mxu0 0.0
    %391 = vmatprep.subr.mxu0 0.0
    %392 = vmatpush1.msra.mxu0 0.0
    %393 = vmatprep.subr.mxu0 0.0
    %394 = vmatpush1.msra.mxu0 0.0
    %395 = vmatprep.subr.mxu0 0.0
    %396 = vmatpush1.msra.mxu0 0.0
    %397 = vmatprep.subr.mxu0 0.0
    %398 = vmatpush1.msra.mxu0 0.0
    %399 = vmatprep.subr.mxu0 0.0
    %400 = vmatpush1.msra.mxu0 0.0
    %401 = vmatprep.subr.mxu0 0.0
    %402 = vmatpush1.msra.mxu0 0.0
    %403 = vmatprep.subr.mxu0 0.0
    %404 = vmatpush1.msra.mxu0 0.0
    %405 = vmatprep.subr.mxu0 0.0
    %406 = vmatpush1.msra.mxu0 0.0
    %407 = vmatprep.subr.mxu0 0.0
    %408 = vmatpush1.msra.mxu0 0.0
    %409 = vmatprep.subr.mxu0 0.0
    %410 = vmatpush1.msra.mxu0 0.0
    %411 = vmatprep.subr.mxu0 0.0
    %412 = vmatpush1.msra.mxu0 0.0
    %413 = vmatprep.subr.mxu0 0.0
    %414 = vmatpush1.msra.mxu0 0.0
    %415 = vmatprep.subr.mxu0 0.0
    %416 = vmatpush1.msra.mxu0 0.0
    %417 = vmatprep.subr.mxu0 0.0
    %418 = vmatpush1.msra.mxu0 0.0
    %419 = vmatprep.subr.mxu0 0.0
    %420 = vmatpush1.msra.mxu0 0.0
    %421 = vmatprep.subr.mxu0 0.0
    %422 = vmatpush1.msra.mxu0 0.0
    %423 = vmatprep.subr.mxu0 0.0
    %424 = vmatpush1.msra.mxu0 0.0
    %425 = vmatprep.subr.mxu0 0.0
    %426 = vmatpush1.msra.mxu0 0.0
    %427 = vmatprep.subr.mxu0 0.0
    %428 = vmatpush1.msra.mxu0 0.0
    %429 = vmatprep.subr.mxu0 0.0
    %430 = vmatpush1.msra.mxu0 0.0
    %431 = vmatprep.subr.mxu0 0.0
    %432 = vmatpush1.msra.mxu0 0.0
    %433 = vmatprep.subr.mxu0 0.0
    %434 = vmatpush1.msra.mxu0 0.0
    %435 = vmatprep.subr.mxu0 0.0
    %436 = vmatpush1.msra.mxu0 0.0
    %437 = vmatprep.subr.mxu0 0.0
    %438 = vmatpush1.msra.mxu0 0.0
    %439 = vmatprep.subr.mxu0 0.0
    %440 = vmatpush1.msra.mxu0 0.0
    %441 = vmatprep.subr.mxu0 0.0
    %442 = vmatpush1.msra.mxu0 0.0
    %443 = vmatprep.subr.mxu0 0.0
    %444 = vmatpush1.msra.mxu0 0.0
    %445 = vmatprep.mubr.f32.mxu0 0.0
    %446 = vmatmul.mubr.f32.gmra.mrb[0].mxu0 %v169
    %v447 = vpop.f32.mrb[0].mxu0
    %v448 = vadd.f32 %v378, %v447
    %v449 = vpop.f32.mrb[0].mxu0
    %450 = vdwg.mxu0
    %v451 = vmax.f32 %v448, 0.0
    %v452 = vld [vmem:[#allocation7] sm:$0xff]
    %v453 = vld [vmem:[#allocation7 + $0x8] sm:$0xff]
    %v454 = vld [vmem:[#allocation7 + $0x10] sm:$0xff]
    %v455 = vld [vmem:[#allocation7 + $0x18] sm:$0xff]
    %v456 = vld [vmem:[#allocation7 + $0x20] sm:$0xff]
    %v457 = vld [vmem:[#allocation7 + $0x28] sm:$0xff]
    %v458 = vld [vmem:[#allocation7 + $0x30] sm:$0xff]
    %v459 = vld [vmem:[#allocation7 + $0x38] sm:$0xff]
    %v460 = vld [vmem:[#allocation7 + $0x40] sm:$0xff]
    %v461 = vld [vmem:[#allocation7 + $0x48] sm:$0xff]
    %v462 = vld [vmem:[#allocation7 + $0x50] sm:$0xff]
    %v463 = vld [vmem:[#allocation7 + $0x58] sm:$0xff]
    %v464 = vld [vmem:[#allocation7 + $0x60] sm:$0xff]
    %v465 = vld [vmem:[#allocation7 + $0x68] sm:$0xff]
    %v466 = vld [vmem:[#allocation7 + $0x70] sm:$0xff]
    %v467 = vld [vmem:[#allocation7 + $0x78] sm:$0xff]
    %v468 = vld [vmem:[%s3 + $0x1] sm:$0x1]
    %v469 = vlaneseq
    %v470 = vshrl.u32 %v469, 7
    %v471 = vsub.s32 0, %v470
    %v472 = vrot.slane %v468, %v471
    %473 = vmatprep.subr.mxu0 0.0
    %474 = vmatpush1.msra.mxu0 %v452
    %475 = vmatprep.subr.mxu0 0.0
    %476 = vmatpush1.msra.mxu0 %v453
    %477 = vmatprep.subr.mxu0 0.0
    %478 = vmatpush1.msra.mxu0 %v454
    %479 = vmatprep.subr.mxu0 0.0
    %480 = vmatpush1.msra.mxu0 %v455
    %481 = vmatprep.subr.mxu0 0.0
    %482 = vmatpush1.msra.mxu0 %v456
    %483 = vmatprep.subr.mxu0 0.0
    %484 = vmatpush1.msra.mxu0 %v457
    %485 = vmatprep.subr.mxu0 0.0
    %486 = vmatpush1.msra.mxu0 %v458
    %487 = vmatprep.subr.mxu0 0.0
    %488 = vmatpush1.msra.mxu0 %v459
    %489 = vmatprep.subr.mxu0 0.0
    %490 = vmatpush1.msra.mxu0 %v460
    %491 = vmatprep.subr.mxu0 0.0
    %492 = vmatpush1.msra.mxu0 %v461
    %493 = vmatprep.subr.mxu0 0.0
    %494 = vmatpush1.msra.mxu0 %v462
    %495 = vmatprep.subr.mxu0 0.0
    %496 = vmatpush1.msra.mxu0 %v463
    %497 = vmatprep.subr.mxu0 0.0
    %498 = vmatpush1.msra.mxu0 %v464
    %499 = vmatprep.subr.mxu0 0.0
    %500 = vmatpush1.msra.mxu0 %v465
    %501 = vmatprep.subr.mxu0 0.0
    %502 = vmatpush1.msra.mxu0 %v466
    %503 = vmatprep.subr.mxu0 0.0
    %504 = vmatpush1.msra.mxu0 %v467
    %505 = vmatprep.subr.mxu0 0.0
    %506 = vmatpush1.msra.mxu0 0.0
    %507 = vmatprep.subr.mxu0 0.0
    %508 = vmatpush1.msra.mxu0 0.0
    %509 = vmatprep.subr.mxu0 0.0
    %510 = vmatpush1.msra.mxu0 0.0
    %511 = vmatprep.subr.mxu0 0.0
    %512 = vmatpush1.msra.mxu0 0.0
    %513 = vmatprep.subr.mxu0 0.0
    %514 = vmatpush1.msra.mxu0 0.0
    %515 = vmatprep.subr.mxu0 0.0
    %516 = vmatpush1.msra.mxu0 0.0
    %517 = vmatprep.subr.mxu0 0.0
    %518 = vmatpush1.msra.mxu0 0.0
    %519 = vmatprep.subr.mxu0 0.0
    %520 = vmatpush1.msra.mxu0 0.0
    %521 = vmatprep.subr.mxu0 0.0
    %522 = vmatpush1.msra.mxu0 0.0
    %523 = vmatprep.subr.mxu0 0.0
    %524 = vmatpush1.msra.mxu0 0.0
    %525 = vmatprep.subr.mxu0 0.0
    %526 = vmatpush1.msra.mxu0 0.0
    %527 = vmatprep.subr.mxu0 0.0
    %528 = vmatpush1.msra.mxu0 0.0
    %529 = vmatprep.subr.mxu0 0.0
    %530 = vmatpush1.msra.mxu0 0.0
    %531 = vmatprep.subr.mxu0 0.0
    %532 = vmatpush1.msra.mxu0 0.0
    %533 = vmatprep.subr.mxu0 0.0
    %534 = vmatpush1.msra.mxu0 0.0
    %535 = vmatprep.subr.mxu0 0.0
    %536 = vmatpush1.msra.mxu0 0.0
    %537 = vmatprep.mubr.f32.mxu0 0.0
    %538 = vmatmul.mubr.f32.gmra.mrb[0].mxu0 %v451
    %v539 = vpop.f32.mrb[0].mxu0
    %v540 = vadd.f32 %v472, %v539
    %v541 = vpop.f32.mrb[0].mxu0
    %542 = vdwg.mxu0
    %v543 = vmax.f32 %v540, 0.0
    %s544 = scalar_lea.vmem [#allocation7], 128
    %v545 = vld [vmem:[%s544] sm:$0xff]
    %v546 = vld [vmem:[%s544 + $0x8] sm:$0xff]
    %v547 = vld [vmem:[%s544 + $0x10] sm:$0xff]
    %v548 = vld [vmem:[%s544 + $0x18] sm:$0xff]
    %v549 = vld [vmem:[%s544 + $0x20] sm:$0xff]
    %v550 = vld [vmem:[%s544 + $0x28] sm:$0xff]
    %v551 = vld [vmem:[%s544 + $0x30] sm:$0xff]
    %v552 = vld [vmem:[%s544 + $0x38] sm:$0xff]
    %v553 = vld [vmem:[%s544 + $0x40] sm:$0xff]
    %v554 = vld [vmem:[%s544 + $0x48] sm:$0xff]
    %v555 = vld [vmem:[%s544 + $0x50] sm:$0xff]
    %v556 = vld [vmem:[%s544 + $0x58] sm:$0xff]
    %v557 = vld [vmem:[%s544 + $0x60] sm:$0xff]
    %v558 = vld [vmem:[%s544 + $0x68] sm:$0xff]
    %v559 = vld [vmem:[%s544 + $0x70] sm:$0xff]
    %v560 = vld [vmem:[%s544 + $0x78] sm:$0xff]
    %v561 = vld [vmem:[%s3 + $0x2] sm:$0x1]
    %v562 = vlaneseq
    %v563 = vshrl.u32 %v562, 7
    %v564 = vsub.s32 0, %v563
    %v565 = vrot.slane %v561, %v564
    %566 = vmatprep.subr.mxu0 0.0
    %567 = vmatpush1.msra.mxu0 %v545
    %568 = vmatprep.subr.mxu0 0.0
    %569 = vmatpush1.msra.mxu0 %v546
    %570 = vmatprep.subr.mxu0 0.0
    %571 = vmatpush1.msra.mxu0 %v547
    %572 = vmatprep.subr.mxu0 0.0
    %573 = vmatpush1.msra.mxu0 %v548
    %574 = vmatprep.subr.mxu0 0.0
    %575 = vmatpush1.msra.mxu0 %v549
    %576 = vmatprep.subr.mxu0 0.0
    %577 = vmatpush1.msra.mxu0 %v550
    %578 = vmatprep.subr.mxu0 0.0
    %579 = vmatpush1.msra.mxu0 %v551
    %580 = vmatprep.subr.mxu0 0.0
    %581 = vmatpush1.msra.mxu0 %v552
    %582 = vmatprep.subr.mxu0 0.0
    %583 = vmatpush1.msra.mxu0 %v553
    %584 = vmatprep.subr.mxu0 0.0
    %585 = vmatpush1.msra.mxu0 %v554
    %586 = vmatprep.subr.mxu0 0.0
    %587 = vmatpush1.msra.mxu0 %v555
    %588 = vmatprep.subr.mxu0 0.0
    %589 = vmatpush1.msra.mxu0 %v556
    %590 = vmatprep.subr.mxu0 0.0
    %591 = vmatpush1.msra.mxu0 %v557
    %592 = vmatprep.subr.mxu0 0.0
    %593 = vmatpush1.msra.mxu0 %v558
    %594 = vmatprep.subr.mxu0 0.0
    %595 = vmatpush1.msra.mxu0 %v559
    %596 = vmatprep.subr.mxu0 0.0
    %597 = vmatpush1.msra.mxu0 %v560
    %598 = vmatprep.subr.mxu0 0.0
    %599 = vmatpush1.msra.mxu0 0.0
    %600 = vmatprep.subr.mxu0 0.0
    %601 = vmatpush1.msra.mxu0 0.0
    %602 = vmatprep.subr.mxu0 0.0
    %603 = vmatpush1.msra.mxu0 0.0
    %604 = vmatprep.subr.mxu0 0.0
    %605 = vmatpush1.msra.mxu0 0.0
    %606 = vmatprep.subr.mxu0 0.0
    %607 = vmatpush1.msra.mxu0 0.0
    %608 = vmatprep.subr.mxu0 0.0
    %609 = vmatpush1.msra.mxu0 0.0
    %610 = vmatprep.subr.mxu0 0.0
    %611 = vmatpush1.msra.mxu0 0.0
    %612 = vmatprep.subr.mxu0 0.0
    %613 = vmatpush1.msra.mxu0 0.0
    %614 = vmatprep.subr.mxu0 0.0
    %615 = vmatpush1.msra.mxu0 0.0
    %616 = vmatprep.subr.mxu0 0.0
    %617 = vmatpush1.msra.mxu0 0.0
    %618 = vmatprep.subr.mxu0 0.0
    %619 = vmatpush1.msra.mxu0 0.0
    %620 = vmatprep.subr.mxu0 0.0
    %621 = vmatpush1.msra.mxu0 0.0
    %622 = vmatprep.subr.mxu0 0.0
    %623 = vmatpush1.msra.mxu0 0.0
    %624 = vmatprep.subr.mxu0 0.0
    %625 = vmatpush1.msra.mxu0 0.0
    %626 = vmatprep.subr.mxu0 0.0
    %627 = vmatpush1.msra.mxu0 0.0
    %628 = vmatprep.subr.mxu0 0.0
    %629 = vmatpush1.msra.mxu0 0.0
    %630 = vmatprep.mubr.f32.mxu0 0.0
    %631 = vmatmul.mubr.f32.gmra.mrb[0].mxu0 %v543
    %v632 = vpop.f32.mrb[0].mxu0
    %v633 = vadd.f32 %v565, %v632
    %v634 = vpop.f32.mrb[0].mxu0
    %635 = vdwg.mxu0
    %v636 = vmax.f32 %v633, 0.0
    %s637 = scalar_lea.vmem [#allocation7], 256
    %v638 = vld [vmem:[%s637] sm:$0xff]
    %v639 = vld [vmem:[%s637 + $0x8] sm:$0xff]
    %v640 = vld [vmem:[%s637 + $0x10] sm:$0xff]
    %v641 = vld [vmem:[%s637 + $0x18] sm:$0xff]
    %v642 = vld [vmem:[%s637 + $0x20] sm:$0xff]
    %v643 = vld [vmem:[%s637 + $0x28] sm:$0xff]
    %v644 = vld [vmem:[%s637 + $0x30] sm:$0xff]
    %v645 = vld [vmem:[%s637 + $0x38] sm:$0xff]
    %v646 = vld [vmem:[%s637 + $0x40] sm:$0xff]
    %v647 = vld [vmem:[%s637 + $0x48] sm:$0xff]
    %v648 = vld [vmem:[%s637 + $0x50] sm:$0xff]
    %v649 = vld [vmem:[%s637 + $0x58] sm:$0xff]
    %v650 = vld [vmem:[%s637 + $0x60] sm:$0xff]
    %v651 = vld [vmem:[%s637 + $0x68] sm:$0xff]
    %v652 = vld [vmem:[%s637 + $0x70] sm:$0xff]
    %v653 = vld [vmem:[%s637 + $0x78] sm:$0xff]
    %v654 = vld [vmem:[%s3 + $0x3] sm:$0x1]
    %v655 = vlaneseq
    %v656 = vshrl.u32 %v655, 7
    %v657 = vsub.s32 0, %v656
    %v658 = vrot.slane %v654, %v657
    %659 = vmatprep.subr.mxu0 0.0
    %660 = vmatpush1.msra.mxu0 %v638
    %661 = vmatprep.subr.mxu0 0.0
    %662 = vmatpush1.msra.mxu0 %v639
    %663 = vmatprep.subr.mxu0 0.0
    %664 = vmatpush1.msra.mxu0 %v640
    %665 = vmatprep.subr.mxu0 0.0
    %666 = vmatpush1.msra.mxu0 %v641
    %667 = vmatprep.subr.mxu0 0.0
    %668 = vmatpush1.msra.mxu0 %v642
    %669 = vmatprep.subr.mxu0 0.0
    %670 = vmatpush1.msra.mxu0 %v643
    %671 = vmatprep.subr.mxu0 0.0
    %672 = vmatpush1.msra.mxu0 %v644
    %673 = vmatprep.subr.mxu0 0.0
    %674 = vmatpush1.msra.mxu0 %v645
    %675 = vmatprep.subr.mxu0 0.0
    %676 = vmatpush1.msra.mxu0 %v646
    %677 = vmatprep.subr.mxu0 0.0
    %678 = vmatpush1.msra.mxu0 %v647
    %679 = vmatprep.subr.mxu0 0.0
    %680 = vmatpush1.msra.mxu0 %v648
    %681 = vmatprep.subr.mxu0 0.0
    %682 = vmatpush1.msra.mxu0 %v649
    %683 = vmatprep.subr.mxu0 0.0
    %684 = vmatpush1.msra.mxu0 %v650
    %685 = vmatprep.subr.mxu0 0.0
    %686 = vmatpush1.msra.mxu0 %v651
    %687 = vmatprep.subr.mxu0 0.0
    %688 = vmatpush1.msra.mxu0 %v652
    %689 = vmatprep.subr.mxu0 0.0
    %690 = vmatpush1.msra.mxu0 %v653
    %691 = vmatprep.subr.mxu0 0.0
    %692 = vmatpush1.msra.mxu0 0.0
    %693 = vmatprep.subr.mxu0 0.0
    %694 = vmatpush1.msra.mxu0 0.0
    %695 = vmatprep.subr.mxu0 0.0
    %696 = vmatpush1.msra.mxu0 0.0
    %697 = vmatprep.subr.mxu0 0.0
    %698 = vmatpush1.msra.mxu0 0.0
    %699 = vmatprep.subr.mxu0 0.0
    %700 = vmatpush1.msra.mxu0 0.0
    %701 = vmatprep.subr.mxu0 0.0
    %702 = vmatpush1.msra.mxu0 0.0
    %703 = vmatprep.subr.mxu0 0.0
    %704 = vmatpush1.msra.mxu0 0.0
    %705 = vmatprep.subr.mxu0 0.0
    %706 = vmatpush1.msra.mxu0 0.0
    %707 = vmatprep.subr.mxu0 0.0
    %708 = vmatpush1.msra.mxu0 0.0
    %709 = vmatprep.subr.mxu0 0.0
    %710 = vmatpush1.msra.mxu0 0.0
    %711 = vmatprep.subr.mxu0 0.0
    %712 = vmatpush1.msra.mxu0 0.0
    %713 = vmatprep.subr.mxu0 0.0
    %714 = vmatpush1.msra.mxu0 0.0
    %715 = vmatprep.subr.mxu0 0.0
    %716 = vmatpush1.msra.mxu0 0.0
    %717 = vmatprep.subr.mxu0 0.0
    %718 = vmatpush1.msra.mxu0 0.0
    %719 = vmatprep.subr.mxu0 0.0
    %720 = vmatpush1.msra.mxu0 0.0
    %721 = vmatprep.subr.mxu0 0.0
    %722 = vmatpush1.msra.mxu0 0.0
    %723 = vmatprep.mubr.f32.mxu0 0.0
    %724 = vmatmul.mubr.f32.gmra.mrb[0].mxu0 %v636
    %v725 = vpop.f32.mrb[0].mxu0
    %v726 = vadd.f32 %v658, %v725
    %v727 = vpop.f32.mrb[0].mxu0
    %728 = vdwg.mxu0
    %v729 = vmax.f32 %v726, 0.0
    %s730 = scalar_lea.vmem [#allocation7], 384
    %v731 = vld [vmem:[%s730] sm:$0xff]
    %v732 = vld [vmem:[%s730 + $0x8] sm:$0xff]
    %v733 = vld [vmem:[%s730 + $0x10] sm:$0xff]
    %v734 = vld [vmem:[%s730 + $0x18] sm:$0xff]
    %v735 = vld [vmem:[%s730 + $0x20] sm:$0xff]
    %v736 = vld [vmem:[%s730 + $0x28] sm:$0xff]
    %v737 = vld [vmem:[%s730 + $0x30] sm:$0xff]
    %v738 = vld [vmem:[%s730 + $0x38] sm:$0xff]
    %v739 = vld [vmem:[%s730 + $0x40] sm:$0xff]
    %v740 = vld [vmem:[%s730 + $0x48] sm:$0xff]
    %v741 = vld [vmem:[%s730 + $0x50] sm:$0xff]
    %v742 = vld [vmem:[%s730 + $0x58] sm:$0xff]
    %v743 = vld [vmem:[%s730 + $0x60] sm:$0xff]
    %v744 = vld [vmem:[%s730 + $0x68] sm:$0xff]
    %v745 = vld [vmem:[%s730 + $0x70] sm:$0xff]
    %v746 = vld [vmem:[%s730 + $0x78] sm:$0xff]
    %v747 = vld [vmem:[%s3 + $0x4] sm:$0x1]
    %v748 = vlaneseq
    %v749 = vshrl.u32 %v748, 7
    %v750 = vsub.s32 0, %v749
    %v751 = vrot.slane %v747, %v750
    %752 = vmatprep.subr.mxu0 0.0
    %753 = vmatpush1.msra.mxu0 %v731
    %754 = vmatprep.subr.mxu0 0.0
    %755 = vmatpush1.msra.mxu0 %v732
    %756 = vmatprep.subr.mxu0 0.0
    %757 = vmatpush1.msra.mxu0 %v733
    %758 = vmatprep.subr.mxu0 0.0
    %759 = vmatpush1.msra.mxu0 %v734
    %760 = vmatprep.subr.mxu0 0.0
    %761 = vmatpush1.msra.mxu0 %v735
    %762 = vmatprep.subr.mxu0 0.0
    %763 = vmatpush1.msra.mxu0 %v736
    %764 = vmatprep.subr.mxu0 0.0
    %765 = vmatpush1.msra.mxu0 %v737
    %766 = vmatprep.subr.mxu0 0.0
    %767 = vmatpush1.msra.mxu0 %v738
    %768 = vmatprep.subr.mxu0 0.0
    %769 = vmatpush1.msra.mxu0 %v739
    %770 = vmatprep.subr.mxu0 0.0
    %771 = vmatpush1.msra.mxu0 %v740
    %772 = vmatprep.subr.mxu0 0.0
    %773 = vmatpush1.msra.mxu0 %v741
    %774 = vmatprep.subr.mxu0 0.0
    %775 = vmatpush1.msra.mxu0 %v742
    %776 = vmatprep.subr.mxu0 0.0
    %777 = vmatpush1.msra.mxu0 %v743
    %778 = vmatprep.subr.mxu0 0.0
    %779 = vmatpush1.msra.mxu0 %v744
    %780 = vmatprep.subr.mxu0 0.0
    %781 = vmatpush1.msra.mxu0 %v745
    %782 = vmatprep.subr.mxu0 0.0
    %783 = vmatpush1.msra.mxu0 %v746
    %784 = vmatprep.subr.mxu0 0.0
    %785 = vmatpush1.msra.mxu0 0.0
    %786 = vmatprep.subr.mxu0 0.0
    %787 = vmatpush1.msra.mxu0 0.0
    %788 = vmatprep.subr.mxu0 0.0
    %789 = vmatpush1.msra.mxu0 0.0
    %790 = vmatprep.subr.mxu0 0.0
    %791 = vmatpush1.msra.mxu0 0.0
    %792 = vmatprep.subr.mxu0 0.0
    %793 = vmatpush1.msra.mxu0 0.0
    %794 = vmatprep.subr.mxu0 0.0
    %795 = vmatpush1.msra.mxu0 0.0
    %796 = vmatprep.subr.mxu0 0.0
    %797 = vmatpush1.msra.mxu0 0.0
    %798 = vmatprep.subr.mxu0 0.0
    %799 = vmatpush1.msra.mxu0 0.0
    %800 = vmatprep.subr.mxu0 0.0
    %801 = vmatpush1.msra.mxu0 0.0
    %802 = vmatprep.subr.mxu0 0.0
    %803 = vmatpush1.msra.mxu0 0.0
    %804 = vmatprep.subr.mxu0 0.0
    %805 = vmatpush1.msra.mxu0 0.0
    %806 = vmatprep.subr.mxu0 0.0
    %807 = vmatpush1.msra.mxu0 0.0
    %808 = vmatprep.subr.mxu0 0.0
    %809 = vmatpush1.msra.mxu0 0.0
    %810 = vmatprep.subr.mxu0 0.0
    %811 = vmatpush1.msra.mxu0 0.0
    %812 = vmatprep.subr.mxu0 0.0
    %813 = vmatpush1.msra.mxu0 0.0
    %814 = vmatprep.subr.mxu0 0.0
    %815 = vmatpush1.msra.mxu0 0.0
    %816 = vmatprep.mubr.f32.mxu0 0.0
    %817 = vmatmul.mubr.f32.gmra.mrb[0].mxu0 %v729
    %v818 = vpop.f32.mrb[0].mxu0
    %v819 = vadd.f32 %v751, %v818
    %v820 = vpop.f32.mrb[0].mxu0
    %821 = vdwg.mxu0
    %v822 = vlaneseq
    %v823 = vand.u32 %v822, 127
    %vm824 = vcmp.lt.s32.totalorder %v823, 10
    %v825 = vsel %vm824, %v819, -inf
    %826 = vmax.xlane.f32.xlu0 %v825
    %v827 = vpop.xlane.xlu0 %826
    %v828 = vsub.f32 %v825, %v827
    %v829 = vmul.f32 %v828, 1.442695
    %v830 = vpow.pop %v829
    %831 = vadd.xlane.f32.xlu0 %v830
    %v832 = vpop.xlane.xlu0 %831
    %v833 = vrcp.pop %v832
    %v834 = vmul.f32 1.0, %v833
    %v835 = vmul.f32 %v830, %v834
    %836 = vst [vmem:[#allocation8] sm:$0xff] %v835
    // Predicated region
    $region30: #{tpu_custom_call.1} parent=1 // pred_check
      _
    $region31: #{tpu_custom_call.1} parent=1 // pred_check_branch
      %838 = sbr.rel (0) target = $region33
    $region32: #{tpu_custom_call.1} parent=1 // pred_region
      %s840 = ssub.s32 128, 128
      %841 = vsyncadd [#allocation4], %s840
      %s843 = sshll.u32 [#allocation8], 4
      %s844 = int_to_ptr.vmem [resolvable:$true] %s843
      %846 = dma.vmem_to_hbm [thread:$0]  %s844, 128, %s4, [#allocation4]
    $region33: #{tpu_custom_call.1} parent=1 // pred_fallthru
      _
    // Predicated region
    $region34: #{tpu_custom_call.1} parent=1 // pred_check
      _
    $region35: #{tpu_custom_call.1} parent=1 // pred_check_branch
      %848 = sbr.rel (0) target = $region37
    $region36: #{tpu_custom_call.1} parent=1 // pred_region
      %849 = dma.done [#allocation4], 128
    $region37: #{tpu_custom_call.1} parent=1 // pred_fallthru
      _
    %850 = vsyncpa [#allocation3], 1
    %851 = vsyncpa [#allocation6], 1
    %852 = vsyncpa [#allocation4], 1

</llo_original>
